<compile_context>
chip_gen: v5e
topology: v5e:2x2
jax: 0.10.0
libtpu: 0.0.40
codegen_flags: <defaults>
</compile_context>

<pallas_src>
import math
import jax
import jax.numpy as jnp
from jax.experimental import pallas as pl
from jax.experimental.pallas import tpu as pltpu


def _round_up(n, m):
    return ((n + m - 1) // m) * m


def _mlp_kernel(x_ref, w1_ref, b1_ref, w2_ref, b2_ref, w3_ref, b3_ref,
                o_ref, h1_ref, h2_ref):
    # Layer 1: whole-tile dot -> VMEM scratch.  w1 stays MXU-stationary for
    # the full tile and the (tile_b, 128) intermediate never lives in vregs.
    h1_ref[...] = jnp.maximum(
        jnp.dot(x_ref[...], w1_ref[...], preferred_element_type=jnp.float32)
        + b1_ref[...],
        0.0,
    )
    # Layer 2: whole-tile dot -> VMEM scratch.
    h2_ref[...] = jnp.maximum(
        jnp.dot(h1_ref[...], w2_ref[...], preferred_element_type=jnp.float32)
        + b2_ref[...],
        0.0,
    )
    # Layer 3: narrow (tile_b, 2) output; a handful of masked vst, noise next
    # to the matmuls, and the HBM writeback stays 8 B/row.
    o_ref[...] = (
        jnp.dot(h2_ref[...], w3_ref[...], preferred_element_type=jnp.float32)
        + b3_ref[...]
    ).astype(o_ref.dtype)


def _choose_tile_b(batch, input_dim, hidden1, hidden2, out_dim, requested):
    if requested is not None:
        tile_b = requested
    else:
        # ~12 MiB scoped-VMEM budget (safe under v5e's 16 MiB default):
        #   2x double-buffered x tile + 2x out tile + h1/h2 scratch,
        #   minus the resident weights/biases.
        budget = 12 * 1024 * 1024
        resident = 4 * (input_dim * hidden1 + hidden1 * hidden2
                        + hidden2 * out_dim + hidden1 + hidden2 + out_dim)
        per_row = 4 * (2 * input_dim + 2 * out_dim + hidden1 + hidden2)
        tile_b = max(8, (budget - resident) // per_row)
        tile_b = min(tile_b, 2048)
        # Megacore (v7x has 2 TCs/chip): keep the batch grid at >= 2 steps
        # whenever the batch is big enough; per-step overhead is ~0.35 us.
        if batch >= 16:
            tile_b = min(tile_b, _round_up(pl.cdiv(batch, 2), 8))
    tile_b = min(tile_b, _round_up(batch, 8))
    return max(8, _round_up(tile_b, 8))


def mlp_forward(x, params, *, tile_b=None):
    """Fused 3-layer MLP forward pass as a batch-tiled Pallas kernel.

    x: (batch, input_dim) float32
    params: dict with w1 (D,128), b1 (1,128), w2 (128,64), b2 (1,64),
            w3 (64,2), b3 (1,2)
    returns: (batch, 2) float32 logits
    """
    batch, input_dim = x.shape
    hidden1 = params["w1"].shape[1]
    hidden2 = params["w2"].shape[1]
    out_dim = params["w3"].shape[1]

    tile_b = _choose_tile_b(batch, input_dim, hidden1, hidden2, out_dim, tile_b)

    # Pad ragged batches with zero rows; they are sliced off after the call.
    padded_batch = _round_up(batch, tile_b)
    if padded_batch != batch:
        x = jnp.pad(x, ((0, padded_batch - batch), (0, 0)))

    grid = (padded_batch // tile_b,)

    def resident(shape):
        # Full-array block, same block every grid step -> stays in VMEM.
        return pl.BlockSpec(shape, lambda i: (0, 0))

    out = pl.pallas_call(
        _mlp_kernel,
        out_shape=jax.ShapeDtypeStruct((padded_batch, out_dim), jnp.float32),
        grid=grid,
        in_specs=[
            pl.BlockSpec((tile_b, input_dim), lambda i: (i, 0)),  # x: streamed
            resident(params["w1"].shape),
            resident(params["b1"].shape),
            resident(params["w2"].shape),
            resident(params["b2"].shape),
            resident(params["w3"].shape),
            resident(params["b3"].shape),
        ],
        out_specs=pl.BlockSpec((tile_b, out_dim), lambda i: (i, 0)),
        scratch_shapes=[
            pltpu.VMEM((tile_b, hidden1), jnp.float32),  # h1
            pltpu.VMEM((tile_b, hidden2), jnp.float32),  # h2
        ],
        compiler_params=pltpu.CompilerParams(
            dimension_semantics=("parallel",),
        ),
    )(
        x,
        params["w1"], params["b1"],
        params["w2"], params["b2"],
        params["w3"], params["b3"],
    )
    return out[:batch]


def init_params(key, input_dim):
    """Deterministic init mirroring nn.Linear's default
    (uniform(-1/sqrt(fan_in), 1/sqrt(fan_in)) for both weight and bias)."""
    keys = jax.random.split(key, 6)

    def linear(kw, kb, fan_in, fan_out):
        bound = 1.0 / math.sqrt(fan_in)
        w = jax.random.uniform(kw, (fan_in, fan_out), jnp.float32, -bound, bound)
        b = jax.random.uniform(kb, (1, fan_out), jnp.float32, -bound, bound)
        return w, b

    w1, b1 = linear(keys[0], keys[1], input_dim, 128)
    w2, b2 = linear(keys[2], keys[3], 128, 64)
    w3, b3 = linear(keys[4], keys[5], 64, 2)
    return {"w1": w1, "b1": b1, "w2": w2, "b2": b2, "w3": w3, "b3": b3}


def mlp_reference(x, p):
    """Pure-JAX reference for correctness checking."""
    h1 = jnp.maximum(x @ p["w1"] + p["b1"], 0.0)
    h2 = jnp.maximum(h1 @ p["w2"] + p["b2"], 0.0)
    return h2 @ p["w3"] + p["b3"]


if __name__ == "__main__":
    key = jax.random.PRNGKey(0)
    k_x, k_p, k_x2, k_p2 = jax.random.split(key, 4)

    # --- Primary check: small shape consistent with the module spec. ---
    batch, input_dim = 8, 32
    x = jax.random.normal(k_x, (batch, input_dim), jnp.float32)
    params = init_params(k_p, input_dim)

    out = jax.block_until_ready(mlp_forward(x, params))
    ref = mlp_reference(x, params)
    assert out.shape == (batch, 2)
    assert jnp.allclose(out, ref, atol=1e-5, rtol=1e-5)

    # --- Secondary check: multi-step batch grid (>=2 steps for megacore)
    #     and ragged padding, with default tile sizing. ---
    batch2, input_dim2 = 200, 160
    x2 = jax.random.normal(k_x2, (batch2, input_dim2), jnp.float32)
    params2 = init_params(k_p2, input_dim2)

    out2 = jax.block_until_ready(mlp_forward(x2, params2))
    ref2 = mlp_reference(x2, params2)
    assert out2.shape == (batch2, 2)
    assert jnp.allclose(out2, ref2, atol=1e-5, rtol=1e-5)

    print("KERNEL_OK")
</pallas_src>

<mosaic_0001>
module attributes {stable_mosaic.version = 11 : i64} {
  func.func @_mlp_kernel(%arg0: i32, %arg1: memref<8x32xf32, #tpu.memory_space<vmem>>, %arg2: memref<32x128xf32, #tpu.memory_space<vmem>>, %arg3: memref<1x128xf32, #tpu.memory_space<vmem>>, %arg4: memref<128x64xf32, #tpu.memory_space<vmem>>, %arg5: memref<1x64xf32, #tpu.memory_space<vmem>>, %arg6: memref<64x2xf32, #tpu.memory_space<vmem>>, %arg7: memref<1x2xf32, #tpu.memory_space<vmem>>, %arg8: memref<8x2xf32, #tpu.memory_space<vmem>>, %arg9: memref<8x128xf32, #tpu.memory_space<vmem>>, %arg10: memref<8x64xf32, #tpu.memory_space<vmem>>) attributes {dimension_semantics = [#tpu.dimension_semantics<parallel>], iteration_bounds = array<i64: 1>, scalar_prefetch = 0 : i64, scratch_operands = 2 : i64, tpu.core_type = #tpu.core_type<tc>, window_params = [{transform_indices = @transform_0, window_bounds = array<i64: 8, 32>}, {pipeline_mode = #tpu.pipeline_mode<synchronous>, transform_indices = @transform_1, window_bounds = array<i64: 32, 128>}, {pipeline_mode = #tpu.pipeline_mode<synchronous>, transform_indices = @transform_2, window_bounds = array<i64: 1, 128>}, {pipeline_mode = #tpu.pipeline_mode<synchronous>, transform_indices = @transform_3, window_bounds = array<i64: 128, 64>}, {pipeline_mode = #tpu.pipeline_mode<synchronous>, transform_indices = @transform_4, window_bounds = array<i64: 1, 64>}, {pipeline_mode = #tpu.pipeline_mode<synchronous>, transform_indices = @transform_5, window_bounds = array<i64: 64, 2>}, {pipeline_mode = #tpu.pipeline_mode<synchronous>, transform_indices = @transform_6, window_bounds = array<i64: 1, 2>}, {transform_indices = @transform_7, window_bounds = array<i64: 8, 2>}]} {
    %c0 = arith.constant 0 : index
    %c0_0 = arith.constant 0 : index
    %0 = vector.load %arg1[%c0, %c0_0] : memref<8x32xf32, #tpu.memory_space<vmem>>, vector<8x32xf32>
    %c0_1 = arith.constant 0 : index
    %c0_2 = arith.constant 0 : index
    %1 = vector.load %arg2[%c0_1, %c0_2] : memref<32x128xf32, #tpu.memory_space<vmem>>, vector<32x128xf32>
    %cst = arith.constant dense<0.000000e+00> : vector<8x128xf32>
    %2 = tpu.matmul %0, %1, %cst {dimension_numbers = #tpu.dot_dimension_numbers<[1], [0], [0], [1], [0, 0, 1, 1], [], []>} : vector<8x32xf32>, vector<32x128xf32>, vector<8x128xf32> -> vector<8x128xf32>
    %c0_3 = arith.constant 0 : index
    %c0_4 = arith.constant 0 : index
    %3 = vector.load %arg3[%c0_3, %c0_4] : memref<1x128xf32, #tpu.memory_space<vmem>>, vector<1x128xf32>
    %4 = vector.broadcast %3 : vector<1x128xf32> to vector<8x128xf32>
    %5 = arith.addf %2, %4 : vector<8x128xf32>
    %cst_5 = arith.constant 0.000000e+00 : f32
    %6 = vector.broadcast %cst_5 : f32 to vector<8x128xf32>
    %7 = arith.maximumf %5, %6 : vector<8x128xf32>
    %c0_6 = arith.constant 0 : index
    %c0_7 = arith.constant 0 : index
    %8 = vector.load %arg9[%c0_6, %c0_7] : memref<8x128xf32, #tpu.memory_space<vmem>>, vector<8x128xf32>
    tpu.vector_store %arg9[%c0_6, %c0_7], %7 {strides = array<i32>} : memref<8x128xf32, #tpu.memory_space<vmem>>, vector<8x128xf32>,
    %c0_8 = arith.constant 0 : index
    %c0_9 = arith.constant 0 : index
    %9 = vector.load %arg9[%c0_8, %c0_9] : memref<8x128xf32, #tpu.memory_space<vmem>>, vector<8x128xf32>
    %c0_10 = arith.constant 0 : index
    %c0_11 = arith.constant 0 : index
    %10 = vector.load %arg4[%c0_10, %c0_11] : memref<128x64xf32, #tpu.memory_space<vmem>>, vector<128x64xf32>
    %cst_12 = arith.constant dense<0.000000e+00> : vector<8x64xf32>
    %11 = tpu.matmul %9, %10, %cst_12 {dimension_numbers = #tpu.dot_dimension_numbers<[1], [0], [0], [1], [0, 0, 1, 1], [], []>} : vector<8x128xf32>, vector<128x64xf32>, vector<8x64xf32> -> vector<8x64xf32>
    %c0_13 = arith.constant 0 : index
    %c0_14 = arith.constant 0 : index
    %12 = vector.load %arg5[%c0_13, %c0_14] : memref<1x64xf32, #tpu.memory_space<vmem>>, vector<1x64xf32>
    %13 = vector.broadcast %12 : vector<1x64xf32> to vector<8x64xf32>
    %14 = arith.addf %11, %13 : vector<8x64xf32>
    %cst_15 = arith.constant 0.000000e+00 : f32
    %15 = vector.broadcast %cst_15 : f32 to vector<8x64xf32>
    %16 = arith.maximumf %14, %15 : vector<8x64xf32>
    %c0_16 = arith.constant 0 : index
    %c0_17 = arith.constant 0 : index
    %17 = vector.load %arg10[%c0_16, %c0_17] : memref<8x64xf32, #tpu.memory_space<vmem>>, vector<8x64xf32>
    tpu.vector_store %arg10[%c0_16, %c0_17], %16 {strides = array<i32>} : memref<8x64xf32, #tpu.memory_space<vmem>>, vector<8x64xf32>,
    %c0_18 = arith.constant 0 : index
    %c0_19 = arith.constant 0 : index
    %18 = vector.load %arg10[%c0_18, %c0_19] : memref<8x64xf32, #tpu.memory_space<vmem>>, vector<8x64xf32>
    %c0_20 = arith.constant 0 : index
    %c0_21 = arith.constant 0 : index
    %19 = vector.load %arg6[%c0_20, %c0_21] : memref<64x2xf32, #tpu.memory_space<vmem>>, vector<64x2xf32>
    %cst_22 = arith.constant dense<0.000000e+00> : vector<8x2xf32>
    %20 = tpu.matmul %18, %19, %cst_22 {dimension_numbers = #tpu.dot_dimension_numbers<[1], [0], [0], [1], [0, 0, 1, 1], [], []>} : vector<8x64xf32>, vector<64x2xf32>, vector<8x2xf32> -> vector<8x2xf32>
    %c0_23 = arith.constant 0 : index
    %c0_24 = arith.constant 0 : index
    %21 = vector.load %arg7[%c0_23, %c0_24] : memref<1x2xf32, #tpu.memory_space<vmem>>, vector<1x2xf32>
    %22 = vector.broadcast %21 : vector<1x2xf32> to vector<8x2xf32>
    %23 = arith.addf %20, %22 : vector<8x2xf32>
    %c0_25 = arith.constant 0 : index
    %c0_26 = arith.constant 0 : index
    %24 = vector.load %arg8[%c0_25, %c0_26] : memref<8x2xf32, #tpu.memory_space<vmem>>, vector<8x2xf32>
    tpu.vector_store %arg8[%c0_25, %c0_26], %23 {strides = array<i32>} : memref<8x2xf32, #tpu.memory_space<vmem>>, vector<8x2xf32>,
    return
  }
  func.func @transform_0(%arg0: i32) -> (i32, i32) {
    %c0_i32 = arith.constant 0 : i32
    %c0_i32_0 = arith.constant 0 : i32
    return %arg0, %c0_i32 : i32, i32
  }
  func.func @transform_1(%arg0: i32) -> (i32, i32) {
    %c0_i32 = arith.constant 0 : i32
    %c0_i32_0 = arith.constant 0 : i32
    %c0_i32_1 = arith.constant 0 : i32
    return %c0_i32, %c0_i32_0 : i32, i32
  }
  func.func @transform_2(%arg0: i32) -> (i32, i32) {
    %c0_i32 = arith.constant 0 : i32
    %c0_i32_0 = arith.constant 0 : i32
    %c0_i32_1 = arith.constant 0 : i32
    return %c0_i32, %c0_i32_0 : i32, i32
  }
  func.func @transform_3(%arg0: i32) -> (i32, i32) {
    %c0_i32 = arith.constant 0 : i32
    %c0_i32_0 = arith.constant 0 : i32
    %c0_i32_1 = arith.constant 0 : i32
    return %c0_i32, %c0_i32_0 : i32, i32
  }
  func.func @transform_4(%arg0: i32) -> (i32, i32) {
    %c0_i32 = arith.constant 0 : i32
    %c0_i32_0 = arith.constant 0 : i32
    %c0_i32_1 = arith.constant 0 : i32
    return %c0_i32, %c0_i32_0 : i32, i32
  }
  func.func @transform_5(%arg0: i32) -> (i32, i32) {
    %c0_i32 = arith.constant 0 : i32
    %c0_i32_0 = arith.constant 0 : i32
    %c0_i32_1 = arith.constant 0 : i32
    return %c0_i32, %c0_i32_0 : i32, i32
  }
  func.func @transform_6(%arg0: i32) -> (i32, i32) {
    %c0_i32 = arith.constant 0 : i32
    %c0_i32_0 = arith.constant 0 : i32
    %c0_i32_1 = arith.constant 0 : i32
    return %c0_i32, %c0_i32_0 : i32, i32
  }
  func.func @transform_7(%arg0: i32) -> (i32, i32) {
    %c0_i32 = arith.constant 0 : i32
    %c0_i32_0 = arith.constant 0 : i32
    return %arg0, %c0_i32 : i32, i32
  }
}

</mosaic_0001>

<llo_original>
// kernel: tpu_custom_call.1
$region0: #{tpu_custom_call.1}
  #allocation0 [shape = 'u32[]', space=smem, size = 0x4, offset = 0x4, fixed_abs, tag = 'smem constant byte address 0x4 - core index']
  #allocation1 [shape = 'u32[72,128]{1,0:T(1,128)}', space=vmem, size = 0x9000, scoped, tag = 'internal scratch']
  #allocation2 [shape = 'f32[8,128]{1,0:T(8,128)}', space=vmem, size = 0x1000, scoped, tag = 'scratch operand']
  #allocation3 [shape = 'f32[8,64]{1,0:T(8,128)}', space=vmem, size = 0x1000, scoped, tag = 'scratch operand']
  %s0 = inlined_call_operand.vmem [shape: f32[8,32], index: 0, kind: input, shape index: {}]
  %s1 = inlined_call_operand.vmem [shape: f32[32,128], index: 1, kind: input, shape index: {}]
  %s2 = inlined_call_operand.vmem [shape: f32[1,128], index: 2, kind: input, shape index: {}]
  %s3 = inlined_call_operand.vmem [shape: f32[128,64], index: 3, kind: input, shape index: {}]
  %s4 = inlined_call_operand.vmem [shape: f32[1,64], index: 4, kind: input, shape index: {}]
  %s5 = inlined_call_operand.vmem [shape: f32[64,2], index: 5, kind: input, shape index: {}]
  %s6 = inlined_call_operand.vmem [shape: f32[1,2], index: 6, kind: input, shape index: {}]
  %s7 = inlined_call_operand.vmem [shape: f32[8,2], index: 7, kind: output, shape index: {}]
  %s8 = sld [smem:[#allocation0]]
  $region38: #{tpu_custom_call.1} parent=0
    _
  %s10 = ssub.s32 1, %s8
  %s11 = scalar_select 0, %s10, %s8
  // Predicated region
  $region2: #{tpu_custom_call.1} parent=0 // pred_check
    _
  $region3: #{tpu_custom_call.1} parent=0 // pred_check_branch
    %13 = sbr.rel (0) target = $region5
  $region4: #{tpu_custom_call.1} parent=0 // pred_region
    _
  $region5: #{tpu_custom_call.1} parent=0 // pred_fallthru
    _
  // Predicated region
  $region6: #{tpu_custom_call.1} parent=0 // pred_check
    _
  $region7: #{tpu_custom_call.1} parent=0 // pred_check_branch
    %15 = sbr.rel (0) target = $region9
  $region8: #{tpu_custom_call.1} parent=0 // pred_region
    _
  $region9: #{tpu_custom_call.1} parent=0 // pred_fallthru
    _
  // Predicated region
  $region10: #{tpu_custom_call.1} parent=0 // pred_check
    _
  $region11: #{tpu_custom_call.1} parent=0 // pred_check_branch
    %17 = sbr.rel (0) target = $region13
  $region12: #{tpu_custom_call.1} parent=0 // pred_region
    _
  $region13: #{tpu_custom_call.1} parent=0 // pred_fallthru
    _
  // Predicated region
  $region14: #{tpu_custom_call.1} parent=0 // pred_check
    _
  $region15: #{tpu_custom_call.1} parent=0 // pred_check_branch
    %19 = sbr.rel (0) target = $region17
  $region16: #{tpu_custom_call.1} parent=0 // pred_region
    _
  $region17: #{tpu_custom_call.1} parent=0 // pred_fallthru
    _
  // Predicated region
  $region18: #{tpu_custom_call.1} parent=0 // pred_check
    _
  $region19: #{tpu_custom_call.1} parent=0 // pred_check_branch
    %21 = sbr.rel (0) target = $region21
  $region20: #{tpu_custom_call.1} parent=0 // pred_region
    _
  $region21: #{tpu_custom_call.1} parent=0 // pred_fallthru
    _
  // Predicated region
  $region22: #{tpu_custom_call.1} parent=0 // pred_check
    _
  $region23: #{tpu_custom_call.1} parent=0 // pred_check_branch
    %23 = sbr.rel (0) target = $region25
  $region24: #{tpu_custom_call.1} parent=0 // pred_region
    _
  $region25: #{tpu_custom_call.1} parent=0 // pred_fallthru
    _
  // Predicated region
  $region26: #{tpu_custom_call.1} parent=0 // pred_check
    _
  $region27: #{tpu_custom_call.1} parent=0 // pred_check_branch
    %25 = sbr.rel (0) target = $region29
  $region28: #{tpu_custom_call.1} parent=0 // pred_region
    _
  $region29: #{tpu_custom_call.1} parent=0 // pred_fallthru
    _
  %v26 = vld [vmem:[%s0] sm:$0xff]
  %v27 = vld [vmem:[%s1] sm:$0xff]
  %v28 = vld [vmem:[%s1 + $0x8] sm:$0xff]
  %v29 = vld [vmem:[%s1 + $0x10] sm:$0xff]
  %v30 = vld [vmem:[%s1 + $0x18] sm:$0xff]
  %v31 = vld [vmem:[%s2] sm:$0x1]
  %v33 = vperm.slane %v31, 0
  %vm35 = vcmask 261120
  %v37 = vsel %vm35, %v26, 0
  %39 = vmatpush.msra.mxu0 0.0
  %40 = vmatpush.msra.mxu0 0.0
  %41 = vmatpush.msra.mxu0 0.0
  %42 = vmatpush.msra.mxu0 0.0
  %43 = vmatpush.msra.mxu0 0.0
  %44 = vmatpush.msra.mxu0 0.0
  %45 = vmatpush.msra.mxu0 0.0
  %46 = vmatpush.msra.mxu0 0.0
  %47 = vmatpush.msra.mxu0 0.0
  %48 = vmatpush.msra.mxu0 0.0
  %49 = vmatpush.msra.mxu0 0.0
  %50 = vmatpush.msra.mxu0 0.0
  %51 = vmatpush.msra.mxu0 %v30
  %52 = vmatpush.msra.mxu0 %v29
  %53 = vmatpush.msra.mxu0 %v28
  %54 = vmatpush.msra.mxu0 %v27
  %55 = vmatmul.f32.gmra.mxu0 %v37
  %v56 = vpop.f32.mrf.mxu0
  %v57 = vadd.f32 %v33, %v56
  %58 = vdwg.mxu0
  %v59 = vmax.f32 %v57, 0.0
  %60 = vst [vmem:[#allocation2] sm:$0xff] %v59
  %v61 = vld [vmem:[#allocation2] sm:$0xff]
  %v62 = vld [vmem:[%s3] sm:$0xff]
  %v63 = vld [vmem:[%s3 + $0x8] sm:$0xff]
  %v64 = vld [vmem:[%s3 + $0x10] sm:$0xff]
  %v65 = vld [vmem:[%s3 + $0x18] sm:$0xff]
  %v66 = vld [vmem:[%s3 + $0x20] sm:$0xff]
  %v67 = vld [vmem:[%s3 + $0x28] sm:$0xff]
  %v68 = vld [vmem:[%s3 + $0x30] sm:$0xff]
  %v69 = vld [vmem:[%s3 + $0x38] sm:$0xff]
  %v70 = vld [vmem:[%s3 + $0x40] sm:$0xff]
  %v71 = vld [vmem:[%s3 + $0x48] sm:$0xff]
  %v72 = vld [vmem:[%s3 + $0x50] sm:$0xff]
  %v73 = vld [vmem:[%s3 + $0x58] sm:$0xff]
  %v74 = vld [vmem:[%s3 + $0x60] sm:$0xff]
  %v75 = vld [vmem:[%s3 + $0x68] sm:$0xff]
  %v76 = vld [vmem:[%s3 + $0x70] sm:$0xff]
  %v77 = vld [vmem:[%s3 + $0x78] sm:$0xff]
  %v78 = vld [vmem:[%s4] sm:$0x1]
  %v80 = vperm.slane %v78, 0
  %82 = vmatpush.msra.mxu0 %v77
  %83 = vmatpush.msra.mxu0 %v76
  %84 = vmatpush.msra.mxu0 %v75
  %85 = vmatpush.msra.mxu0 %v74
  %86 = vmatpush.msra.mxu0 %v73
  %87 = vmatpush.msra.mxu0 %v72
  %88 = vmatpush.msra.mxu0 %v71
  %89 = vmatpush.msra.mxu0 %v70
  %90 = vmatpush.msra.mxu0 %v69
  %91 = vmatpush.msra.mxu0 %v68
  %92 = vmatpush.msra.mxu0 %v67
  %93 = vmatpush.msra.mxu0 %v66
  %94 = vmatpush.msra.mxu0 %v65
  %95 = vmatpush.msra.mxu0 %v64
  %96 = vmatpush.msra.mxu0 %v63
  %97 = vmatpush.msra.mxu0 %v62
  %98 = vmatmul.f32.gmra.mxu0 %v61
  %v99 = vpop.f32.mrf.mxu0
  %v100 = vadd.f32 %v80, %v99
  %101 = vdwg.mxu0
  %v102 = vmax.f32 %v100, 0.0
  %vm103 = vcmask 523264
  %104 = vst.msk [vmem:[#allocation3] sm:$0xff] %vm103, %v102
  %v105 = vld [vmem:[#allocation3] sm:$0xff]
  %v106 = vld [vmem:[%s5] sm:$0xff]
  %v107 = vld [vmem:[%s5 + $0x8] sm:$0xff]
  %v108 = vld [vmem:[%s5 + $0x10] sm:$0xff]
  %v109 = vld [vmem:[%s5 + $0x18] sm:$0xff]
  %v110 = vld [vmem:[%s5 + $0x20] sm:$0xff]
  %v111 = vld [vmem:[%s5 + $0x28] sm:$0xff]
  %v112 = vld [vmem:[%s5 + $0x30] sm:$0xff]
  %v113 = vld [vmem:[%s5 + $0x38] sm:$0xff]
  %v114 = vld [vmem:[%s6] sm:$0x1]
  %v116 = vperm.slane %v114, 0
  %v119 = vsel %vm103, %v105, 0
  %121 = vmatpush.msra.mxu0 0.0
  %122 = vmatpush.msra.mxu0 0.0
  %123 = vmatpush.msra.mxu0 0.0
  %124 = vmatpush.msra.mxu0 0.0
  %125 = vmatpush.msra.mxu0 0.0
  %126 = vmatpush.msra.mxu0 0.0
  %127 = vmatpush.msra.mxu0 0.0
  %128 = vmatpush.msra.mxu0 0.0
  %129 = vmatpush.msra.mxu0 %v113
  %130 = vmatpush.msra.mxu0 %v112
  %131 = vmatpush.msra.mxu0 %v111
  %132 = vmatpush.msra.mxu0 %v110
  %133 = vmatpush.msra.mxu0 %v109
  %134 = vmatpush.msra.mxu0 %v108
  %135 = vmatpush.msra.mxu0 %v107
  %136 = vmatpush.msra.mxu0 %v106
  %137 = vmatmul.f32.gmra.mxu0 %v119
  %v138 = vpop.f32.mrf.mxu0
  %v139 = vadd.f32 %v116, %v138
  %140 = vdwg.mxu0
  %vm141 = vcmask 15360
  %142 = vst.msk [vmem:[%s7] sm:$0xff] %vm141, %v139
  // Predicated region
  $region30: #{tpu_custom_call.1} parent=0 // pred_check
    _
  $region31: #{tpu_custom_call.1} parent=0 // pred_check_branch
    %144 = sbr.rel (0) target = $region33
  $region32: #{tpu_custom_call.1} parent=0 // pred_region
    _
  $region33: #{tpu_custom_call.1} parent=0 // pred_fallthru
    _
  // Predicated region
  $region34: #{tpu_custom_call.1} parent=0 // pred_check
    _
  $region35: #{tpu_custom_call.1} parent=0 // pred_check_branch
    %146 = sbr.rel (0) target = $region37
  $region36: #{tpu_custom_call.1} parent=0 // pred_region
    _
  $region37: #{tpu_custom_call.1} parent=0 // pred_fallthru
    _

</llo_original>
